<compile_context>
chip_gen: v5e
topology: v5e:2x2
jax: 0.10.0
libtpu: 0.0.40
codegen_flags: <defaults>
</compile_context>

<pallas_src>
import functools
import math

import numpy as np
import jax
import jax.numpy as jnp
from jax.experimental import pallas as pl
from jax.experimental.pallas import tpu as pltpu


def _act_select_kernel(x_ref, idx_ref, o_ref, *, reps):
    """Per-position activation mux.

    x_ref : (rows, blk)  input tile (any float dtype; compute in f32)
    idx_ref: (R, blk)    int32 activation codes; rows repeat with period R
    o_ref : (rows, blk)  output tile (same dtype as input)
    reps  : rows // R (static); >1 means idx must be tiled over batch groups
    """
    x = x_ref[...].astype(jnp.float32)
    idx = idx_ref[...]
    if reps > 1:
        idx = jnp.tile(idx, (reps, 1))          # VMEM-local broadcast over batch

    # Shared transcendental: e = exp(-|x|) in (0, 1]; never overflows.
    e = jnp.exp(-jnp.abs(x))

    # sigmoid, numerically stable split form:
    #   x >= 0: 1/(1+e)        x < 0: e/(1+e)
    r = pl.reciprocal(1.0 + e, approx=True)
    sig = jnp.where(x >= 0.0, r, e * r)

    # tanh = sign(x) * (1 - e^2) / (1 + e^2)
    e2 = e * e
    t = (1.0 - e2) * pl.reciprocal(1.0 + e2, approx=True)
    tanh = jnp.where(x >= 0.0, t, -t)

    # relu / leaky_relu / elu / identity all equal x for x > 0: select only the
    # negative-branch value by code, then one final where(x > 0, x, neg).
    neg = x                                     # identity / unknown code
    neg = jnp.where(idx == 0, 0.0, neg)         # relu
    neg = jnp.where(idx == 3, 0.01 * x, neg)    # leaky_relu(0.01)
    neg = jnp.where(idx == 4, e - 1.0, neg)     # elu: exp(x)-1 == e-1 for x<=0
    out = jnp.where(x > 0.0, x, neg)

    out = jnp.where(idx == 1, sig, out)
    out = jnp.where(idx == 2, tanh, out)

    o_ref[...] = out.astype(o_ref.dtype)


def _choose_blk(rows, cols, itemsize):
    """Lane-block selection: big, lane-dense, VMEM-safe, >=2 grid steps if possible."""
    # Tiny problem -> single grid step with full-array blocks (kills per-step overhead).
    if rows * cols * itemsize <= (1 << 20):
        return cols
    # Keep each x block <= ~2 MiB so x+out (double-buffered) stays well inside
    # every generation's scoped-VMEM default (16 MiB on v5e, 32 MiB on v6e/v7x).
    budget_lanes = max(128, ((2 << 20) // max(1, rows * itemsize)) // 128 * 128)
    for cand in (4096, 2048, 1024, 512, 256, 128):
        if cand <= budget_lanes and cols % cand == 0 and cols // cand >= 2:
            return cand
    return cols  # fallback: one full-width block


def conv_layer_activation(x, activations):
    """x: NCHW (or any N,...) float array. activations: int32 vector, len = prod(x.shape[1:])."""
    B = x.shape[0]
    F = int(np.prod(x.shape[1:]))
    assert activations.shape == (F,)

    # Fold feature chunks into the row (sublane) dim so rows become a multiple
    # of 8 when B < 8; the per-column activation codes fold consistently.
    R = 8 // math.gcd(B, 8)
    if F % R != 0:
        R = 1
    rows, cols = B * R, F // R
    reps = 1 if R == 1 else rows // R

    xf = x.reshape(rows, cols)
    idx2d = activations.reshape(R, cols).astype(jnp.int32)

    blk = _choose_blk(rows, cols, jnp.dtype(x.dtype).itemsize)
    grid = (cols // blk,)

    out_flat = pl.pallas_call(
        functools.partial(_act_select_kernel, reps=reps),
        out_shape=jax.ShapeDtypeStruct((rows, cols), x.dtype),
        grid_spec=pl.GridSpec(
            grid=grid,
            in_specs=[
                pl.BlockSpec((rows, blk), lambda j: (0, j)),   # x tile
                pl.BlockSpec((R, blk), lambda j: (0, j)),      # activation codes
            ],
            out_specs=pl.BlockSpec((rows, blk), lambda j: (0, j)),
        ),
        compiler_params=pltpu.CompilerParams(
            dimension_semantics=("parallel",)),
    )(xf, idx2d)

    return out_flat.reshape(x.shape)


def _reference(x, activations):
    """Pure-JAX reference mirroring the PyTorch per-column loop."""
    B = x.shape[0]
    F = int(np.prod(x.shape[1:]))
    xf = x.reshape(B, F).astype(jnp.float32)
    idx = activations.reshape(1, F)
    out = xf                                                    # identity / fallback
    out = jnp.where(idx == 0, jnp.maximum(xf, 0.0), out)        # relu
    out = jnp.where(idx == 1, jax.nn.sigmoid(xf), out)          # sigmoid
    out = jnp.where(idx == 2, jnp.tanh(xf), out)                # tanh
    out = jnp.where(idx == 3, jnp.where(xf > 0.0, xf, 0.01 * xf), out)          # lrelu
    out = jnp.where(idx == 4, jnp.where(xf > 0.0, xf, jnp.exp(xf) - 1.0), out)  # elu
    return out.reshape(x.shape).astype(x.dtype)


if __name__ == "__main__":
    key = jax.random.PRNGKey(0)
    kx, ka = jax.random.split(key)

    # Small NCHW input consistent with a conv feature map: (B=2, C=4, H=16, W=16)
    x = jax.random.normal(kx, (2, 4, 16, 16), dtype=jnp.float32)
    F = 4 * 16 * 16
    # Deterministic per-position activation choices (stand-in for self.activations)
    activations = jax.random.randint(ka, (F,), 0, 6, dtype=jnp.int32)

    out = conv_layer_activation(x, activations)
    out = jax.block_until_ready(out)

    ref = _reference(x, activations)
    # Tolerance loosened slightly because sigmoid/tanh use pl.reciprocal(approx=True).
    np.testing.assert_allclose(np.asarray(out), np.asarray(ref), rtol=2e-3, atol=2e-3)

    print("KERNEL_OK")
</pallas_src>

<mosaic_0001>
module attributes {stable_mosaic.version = 11 : i64} {
  func.func @_act_select_kernel(%arg0: i32, %arg1: memref<8x256xf32, #tpu.memory_space<vmem>>, %arg2: memref<4x256xi32, #tpu.memory_space<vmem>>, %arg3: memref<8x256xf32, #tpu.memory_space<vmem>>) attributes {dimension_semantics = [#tpu.dimension_semantics<parallel>], iteration_bounds = array<i64: 1>, scalar_prefetch = 0 : i64, scratch_operands = 0 : i64, tpu.core_type = #tpu.core_type<tc>, window_params = [{transform_indices = @transform_0, window_bounds = array<i64: 8, 256>}, {transform_indices = @transform_1, window_bounds = array<i64: 4, 256>}, {transform_indices = @transform_2, window_bounds = array<i64: 8, 256>}]} {
    %c0 = arith.constant 0 : index
    %c0_0 = arith.constant 0 : index
    %0 = vector.load %arg1[%c0, %c0_0] : memref<8x256xf32, #tpu.memory_space<vmem>>, vector<8x256xf32>
    %c0_1 = arith.constant 0 : index
    %c0_2 = arith.constant 0 : index
    %1 = vector.load %arg2[%c0_1, %c0_2] : memref<4x256xi32, #tpu.memory_space<vmem>>, vector<4x256xi32>
    %2 = tpu.concatenate %1, %1 in 0 : vector<4x256xi32>, vector<4x256xi32> -> vector<8x256xi32>
    %3 = math.absf %0 : vector<8x256xf32>
    %cst = arith.constant 0.000000e+00 : f32
    %4 = vector.broadcast %cst : f32 to vector<8x256xf32>
    %5 = arith.subf %4, %3 : vector<8x256xf32>
    %6 = math.exp %5 : vector<8x256xf32>
    %cst_3 = arith.constant 1.000000e+00 : f32
    %7 = vector.broadcast %cst_3 : f32 to vector<8x256xf32>
    %8 = arith.addf %7, %6 : vector<8x256xf32>
    %9 = tpu.reciprocal %8 {approx = true} : vector<8x256xf32> -> vector<8x256xf32>
    %cst_4 = arith.constant 0.000000e+00 : f32
    %10 = vector.broadcast %cst_4 : f32 to vector<8x256xf32>
    %11 = arith.cmpf oge, %0, %10 : vector<8x256xf32>
    %12 = arith.mulf %6, %9 : vector<8x256xf32>
    %13 = arith.select %11, %9, %12 : vector<8x256xi1>, vector<8x256xf32>
    %14 = arith.mulf %6, %6 : vector<8x256xf32>
    %cst_5 = arith.constant 1.000000e+00 : f32
    %15 = vector.broadcast %cst_5 : f32 to vector<8x256xf32>
    %16 = arith.subf %15, %14 : vector<8x256xf32>
    %cst_6 = arith.constant 1.000000e+00 : f32
    %17 = vector.broadcast %cst_6 : f32 to vector<8x256xf32>
    %18 = arith.addf %17, %14 : vector<8x256xf32>
    %19 = tpu.reciprocal %18 {approx = true} : vector<8x256xf32> -> vector<8x256xf32>
    %20 = arith.mulf %16, %19 : vector<8x256xf32>
    %cst_7 = arith.constant 0.000000e+00 : f32
    %21 = vector.broadcast %cst_7 : f32 to vector<8x256xf32>
    %22 = arith.cmpf oge, %0, %21 : vector<8x256xf32>
    %cst_8 = arith.constant 0.000000e+00 : f32
    %23 = vector.broadcast %cst_8 : f32 to vector<8x256xf32>
    %24 = arith.subf %23, %20 : vector<8x256xf32>
    %25 = arith.select %22, %20, %24 : vector<8x256xi1>, vector<8x256xf32>
    %c0_i32 = arith.constant 0 : i32
    %26 = vector.broadcast %c0_i32 : i32 to vector<8x256xi32>
    %27 = arith.cmpi eq, %2, %26 : vector<8x256xi32>
    %cst_9 = arith.constant 0.000000e+00 : f32
    %28 = vector.broadcast %cst_9 : f32 to vector<8x256xf32>
    %29 = arith.select %27, %28, %0 : vector<8x256xi1>, vector<8x256xf32>
    %c3_i32 = arith.constant 3 : i32
    %30 = vector.broadcast %c3_i32 : i32 to vector<8x256xi32>
    %31 = arith.cmpi eq, %2, %30 : vector<8x256xi32>
    %cst_10 = arith.constant 0.00999999977 : f32
    %32 = vector.broadcast %cst_10 : f32 to vector<8x256xf32>
    %33 = arith.mulf %32, %0 : vector<8x256xf32>
    %34 = arith.select %31, %33, %29 : vector<8x256xi1>, vector<8x256xf32>
    %c4_i32 = arith.constant 4 : i32
    %35 = vector.broadcast %c4_i32 : i32 to vector<8x256xi32>
    %36 = arith.cmpi eq, %2, %35 : vector<8x256xi32>
    %cst_11 = arith.constant 1.000000e+00 : f32
    %37 = vector.broadcast %cst_11 : f32 to vector<8x256xf32>
    %38 = arith.subf %6, %37 : vector<8x256xf32>
    %39 = arith.select %36, %38, %34 : vector<8x256xi1>, vector<8x256xf32>
    %cst_12 = arith.constant 0.000000e+00 : f32
    %40 = vector.broadcast %cst_12 : f32 to vector<8x256xf32>
    %41 = arith.cmpf ogt, %0, %40 : vector<8x256xf32>
    %42 = arith.select %41, %0, %39 : vector<8x256xi1>, vector<8x256xf32>
    %c1_i32 = arith.constant 1 : i32
    %43 = vector.broadcast %c1_i32 : i32 to vector<8x256xi32>
    %44 = arith.cmpi eq, %2, %43 : vector<8x256xi32>
    %45 = arith.select %44, %13, %42 : vector<8x256xi1>, vector<8x256xf32>
    %c2_i32 = arith.constant 2 : i32
    %46 = vector.broadcast %c2_i32 : i32 to vector<8x256xi32>
    %47 = arith.cmpi eq, %2, %46 : vector<8x256xi32>
    %48 = arith.select %47, %25, %45 : vector<8x256xi1>, vector<8x256xf32>
    %c0_13 = arith.constant 0 : index
    %c0_14 = arith.constant 0 : index
    %49 = vector.load %arg3[%c0_13, %c0_14] : memref<8x256xf32, #tpu.memory_space<vmem>>, vector<8x256xf32>
    tpu.vector_store %arg3[%c0_13, %c0_14], %48 {strides = array<i32>} : memref<8x256xf32, #tpu.memory_space<vmem>>, vector<8x256xf32>,
    return
  }
  func.func @transform_0(%arg0: i32) -> (i32, i32) {
    %c0_i32 = arith.constant 0 : i32
    %c0_i32_0 = arith.constant 0 : i32
    return %c0_i32, %arg0 : i32, i32
  }
  func.func @transform_1(%arg0: i32) -> (i32, i32) {
    %c0_i32 = arith.constant 0 : i32
    %c0_i32_0 = arith.constant 0 : i32
    return %c0_i32, %arg0 : i32, i32
  }
  func.func @transform_2(%arg0: i32) -> (i32, i32) {
    %c0_i32 = arith.constant 0 : i32
    %c0_i32_0 = arith.constant 0 : i32
    return %c0_i32, %arg0 : i32, i32
  }
}

</mosaic_0001>

<llo_original>
// kernel: tpu_custom_call.1
$region0: #{tpu_custom_call.1}
  #allocation0 [shape = 'u32[]', space=smem, size = 0x4, offset = 0x4, fixed_abs, tag = 'smem constant byte address 0x4 - core index']
  #allocation1 [shape = 'u32[72,128]{1,0:T(1,128)}', space=vmem, size = 0x9000, scoped, tag = 'internal scratch']
  %s0 = inlined_call_operand.hbm [shape: f32[8,256], index: 0, kind: input, shape index: {}]
  %s1 = inlined_call_operand.hbm [shape: s32[4,256], index: 1, kind: input, shape index: {}]
  %s2 = inlined_call_operand.hbm [shape: f32[8,256], index: 2, kind: output, shape index: {}]
  %s3 = sld [smem:[#allocation0]]
  $region26: #{tpu_custom_call.1} parent=0
    _
  %s5 = ssub.s32 1, %s3
  %s6 = scalar_select 0, %s5, %s3
  $region1: #{tpu_custom_call.1} parent=0
    #allocation2 [shape = 'u8[8192]{0}', space=vmem, size = 0x2000, scoped, tag = 'input window, operand 0, single buffered']
    #allocation3 [shape = 's32[1]{0}', space=sflag, size = 0x4, scoped, tag = 'scoped memory for tpu_custom_call.1']
    #allocation4 [shape = 's32[1]{0}', space=sflag, size = 0x4, scoped, tag = 'scoped memory for tpu_custom_call.1']
    #allocation5 [shape = 'u8[4096]{0}', space=vmem, size = 0x1000, scoped, tag = 'input window, operand 1, single buffered']
    #allocation6 [shape = 's32[1]{0}', space=sflag, size = 0x4, scoped, tag = 'scoped memory for tpu_custom_call.1']
    #allocation7 [shape = 'u8[8192]{0}', space=vmem, size = 0x2000, scoped, tag = 'output window, operand 0, single buffered']
    %7 = vsyncpa [#allocation3], 0
    %8 = vsyncpa [#allocation6], 0
    %9 = vsyncpa [#allocation4], 0
    // Predicated region
    $region2: #{tpu_custom_call.1} parent=1 // pred_check
      _
    $region3: #{tpu_custom_call.1} parent=1 // pred_check_branch
      %11 = sbr.rel (0) target = $region5
    $region4: #{tpu_custom_call.1} parent=1 // pred_region
      %13 = vsyncadd [#allocation3], 0
      %s15 = sshll.u32 %s0, 4
      %s16 = int_to_ptr.hbm [resolvable:$true] %s15
      %s17 = sshll.u32 [#allocation2], 4
      %s18 = int_to_ptr.vmem [resolvable:$true] %s17
      %20 = dma.hbm_to_vmem [thread:$0]  %s16, 256, %s18, [#allocation3]
    $region5: #{tpu_custom_call.1} parent=1 // pred_fallthru
      _
    // Predicated region
    $region6: #{tpu_custom_call.1} parent=1 // pred_check
      _
    $region7: #{tpu_custom_call.1} parent=1 // pred_check_branch
      %22 = sbr.rel (0) target = $region9
    $region8: #{tpu_custom_call.1} parent=1 // pred_region
      %24 = vsyncadd [#allocation6], 0
      %s26 = sshll.u32 %s1, 4
      %s27 = int_to_ptr.hbm [resolvable:$true] %s26
      %s28 = sshll.u32 [#allocation5], 4
      %s29 = int_to_ptr.vmem [resolvable:$true] %s28
      %31 = dma.hbm_to_vmem [thread:$0]  %s27, 128, %s29, [#allocation6]
    $region9: #{tpu_custom_call.1} parent=1 // pred_fallthru
      _
    // Predicated region
    $region10: #{tpu_custom_call.1} parent=1 // pred_check
      _
    $region11: #{tpu_custom_call.1} parent=1 // pred_check_branch
      %33 = sbr.rel (0) target = $region13
    $region12: #{tpu_custom_call.1} parent=1 // pred_region
      %35 = dma.done [#allocation3], 256
    $region13: #{tpu_custom_call.1} parent=1 // pred_fallthru
      _
    // Predicated region
    $region14: #{tpu_custom_call.1} parent=1 // pred_check
      _
    $region15: #{tpu_custom_call.1} parent=1 // pred_check_branch
      %37 = sbr.rel (0) target = $region17
    $region16: #{tpu_custom_call.1} parent=1 // pred_region
      %39 = dma.done [#allocation6], 128
    $region17: #{tpu_custom_call.1} parent=1 // pred_fallthru
      _
    %v40 = vld [vmem:[#allocation2] sm:$0xff]
    %v41 = vld [vmem:[#allocation2 + $0x8] sm:$0xff]
    %v42 = vld [vmem:[#allocation5] sm:$0xff]
    %43 = vst [vmem:[#allocation1] ss:$2 sm:$0xff] %v42
    %v44 = vld.sshfl [vmem:[#allocation1] sm:$0xff pattern:$0x75316420]
    %v45 = vld.sshfl [vmem:[#allocation1 + $0x8] sm:$0xff pattern:$0x75316420]
    %s46 = scalar_lea.vmem [#allocation1], 1
    %47 = vst [vmem:[%s46] ss:$2 sm:$0xff] %v42
    %v48 = vld.sshfl [vmem:[#allocation1] sm:$0xff pattern:$0x75316420]
    %v49 = vld.sshfl [vmem:[#allocation1 + $0x8] sm:$0xff pattern:$0x75316420]
    %vm50 = vcmask 1043456
    %v51 = vsel %vm50, %v44, %v48
    %v52 = vsel %vm50, %v45, %v49
    %v53 = vand.u32 2147483647, %v40
    %v54 = vand.u32 2147483647, %v41
    %v55 = vsub.f32 0.0, %v53
    %v56 = vsub.f32 0.0, %v54
    %v57 = vmul.f32 %v55, 1.442695
    %v58 = vpow.pop %v57
    %v59 = vmul.f32 %v56, 1.442695
    %v60 = vpow.pop %v59
    %v61 = vadd.f32 %v58, 1.0
    %v62 = vadd.f32 %v60, 1.0
    %v63 = vrcp.pop %v61
    %v64 = vrcp.pop %v62
    %vm65 = vcmp.ge.f32.partialorder %v40, 0.0
    %vm66 = vcmp.ge.f32.partialorder %v41, 0.0
    %v67 = vmul.f32 %v58, %v63
    %v68 = vmul.f32 %v60, %v64
    %v69 = vsel %vm65, %v63, %v67
    %v70 = vsel %vm66, %v64, %v68
    %v71 = vmul.f32 %v58, %v58
    %v72 = vmul.f32 %v60, %v60
    %v73 = vsub.f32 1.0, %v71
    %v74 = vsub.f32 1.0, %v72
    %v75 = vadd.f32 %v71, 1.0
    %v76 = vadd.f32 %v72, 1.0
    %v77 = vrcp.pop %v75
    %v78 = vrcp.pop %v76
    %v79 = vmul.f32 %v73, %v77
    %v80 = vmul.f32 %v74, %v78
    %v81 = vsub.f32 0.0, %v79
    %v82 = vsub.f32 0.0, %v80
    %v83 = vsel %vm65, %v79, %v81
    %v84 = vsel %vm66, %v80, %v82
    %vm85 = vcmp.eq.s32.totalorder %v51, 0
    %vm86 = vcmp.eq.s32.totalorder %v52, 0
    %v87 = vsel %vm85, 0.0, %v40
    %v88 = vsel %vm86, 0.0, %v41
    %vm89 = vcmp.eq.s32.totalorder %v51, 3
    %vm90 = vcmp.eq.s32.totalorder %v52, 3
    %v91 = vmul.f32 %v40, 0.01
    %v92 = vmul.f32 %v41, 0.01
    %v93 = vsel %vm89, %v91, %v87
    %v94 = vsel %vm90, %v92, %v88
    %vm95 = vcmp.eq.s32.totalorder %v51, 4
    %vm96 = vcmp.eq.s32.totalorder %v52, 4
    %v97 = vsub.f32 %v58, 1.0
    %v98 = vsub.f32 %v60, 1.0
    %v99 = vsel %vm95, %v97, %v93
    %v100 = vsel %vm96, %v98, %v94
    %vm101 = vcmp.gt.f32.partialorder %v40, 0.0
    %vm102 = vcmp.gt.f32.partialorder %v41, 0.0
    %v103 = vsel %vm101, %v40, %v99
    %v104 = vsel %vm102, %v41, %v100
    %vm105 = vcmp.eq.s32.totalorder %v51, 1
    %vm106 = vcmp.eq.s32.totalorder %v52, 1
    %v107 = vsel %vm105, %v69, %v103
    %v108 = vsel %vm106, %v70, %v104
    %vm109 = vcmp.eq.s32.totalorder %v51, 2
    %vm110 = vcmp.eq.s32.totalorder %v52, 2
    %v111 = vsel %vm109, %v83, %v107
    %v112 = vsel %vm110, %v84, %v108
    %113 = vst [vmem:[#allocation7] sm:$0xff] %v111
    %114 = vst [vmem:[#allocation7 + $0x8] sm:$0xff] %v112
    // Predicated region
    $region18: #{tpu_custom_call.1} parent=1 // pred_check
      _
    $region19: #{tpu_custom_call.1} parent=1 // pred_check_branch
      %116 = sbr.rel (0) target = $region21
    $region20: #{tpu_custom_call.1} parent=1 // pred_region
      %118 = vsyncadd [#allocation4], 0
      %s120 = sshll.u32 [#allocation7], 4
      %s121 = int_to_ptr.vmem [resolvable:$true] %s120
      %s122 = sshll.u32 %s2, 4
      %s123 = int_to_ptr.hbm [resolvable:$true] %s122
      %125 = dma.vmem_to_hbm [thread:$0]  %s121, 256, %s123, [#allocation4]
    $region21: #{tpu_custom_call.1} parent=1 // pred_fallthru
      _
    // Predicated region
    $region22: #{tpu_custom_call.1} parent=1 // pred_check
      _
    $region23: #{tpu_custom_call.1} parent=1 // pred_check_branch
      %127 = sbr.rel (0) target = $region25
    $region24: #{tpu_custom_call.1} parent=1 // pred_region
      %129 = dma.done [#allocation4], 256
    $region25: #{tpu_custom_call.1} parent=1 // pred_fallthru
      _
    %130 = vsyncpa [#allocation3], 1
    %131 = vsyncpa [#allocation6], 1
    %132 = vsyncpa [#allocation4], 1

</llo_original>
